<compile_context>
chip_gen: v5e
topology: v5e:2x2
jax: 0.10.0
libtpu: 0.0.40
codegen_flags: <defaults>
</compile_context>

<pallas_src>
import functools

import jax
import jax.numpy as jnp
from jax.experimental import pallas as pl
from jax.experimental.pallas import tpu as pltpu

BN_EPS = 1e-5
LANE = 128
SUBLANE = 16  # bf16-safe sublane multiple


def _round_up(n, m):
    return ((n + m - 1) // m) * m


def _cdiv(a, b):
    return -(-a // b)


# ----------------------------------------------------------------------------
# Kernel
# ----------------------------------------------------------------------------
def mlp_kernel(x_ref, w1_ref, w2_ref, w3_ref, w4_ref, b_ref, o_ref, *, offs, dims):
    """Fused MLP tile: fc1(+bn1)->relu -> fc2(+bn2)->relu -> fc3->relu -> fc4.

    Matmuls run in bf16 on the MXU with f32 accumulation; bias/relu in f32.
    Dropout layers are identity (inference semantics).
    """
    o1, o2, o3, o4 = offs
    d1, d2, d3, d4 = dims

    # x arrives f32 (no wrapper-side bf16 copy); cast in-kernel for the MXU.
    h = jnp.dot(x_ref[...].astype(jnp.bfloat16), w1_ref[...],
                preferred_element_type=jnp.float32)
    h = jnp.maximum(h + b_ref[:, o1:o1 + d1], 0.0)

    h = jnp.dot(h.astype(jnp.bfloat16), w2_ref[...], preferred_element_type=jnp.float32)
    h = jnp.maximum(h + b_ref[:, o2:o2 + d2], 0.0)

    h = jnp.dot(h.astype(jnp.bfloat16), w3_ref[...], preferred_element_type=jnp.float32)
    h = jnp.maximum(h + b_ref[:, o3:o3 + d3], 0.0)

    h = jnp.dot(h.astype(jnp.bfloat16), w4_ref[...], preferred_element_type=jnp.float32)
    # Lane-dense (128-wide) bf16 writeback: halves HBM write bytes vs f32.
    o_ref[...] = (h + b_ref[:, o4:o4 + d4]).astype(o_ref.dtype)


# ----------------------------------------------------------------------------
# Parameter folding / packing (trace time, outside the kernel)
# ----------------------------------------------------------------------------
def fold_params(p):
    """Fold BN into fc1/fc2, pad fc4 to a lane-dense (128-multiple) output,
    cast weights to bf16 and pack all biases into a single f32 row."""
    s1 = p["g1"] * jax.lax.rsqrt(p["v1"] + BN_EPS)
    w1 = p["w1"] * s1
    b1 = (p["b1"] - p["m1"]) * s1 + p["be1"]

    s2 = p["g2"] * jax.lax.rsqrt(p["v2"] + BN_EPS)
    w2 = p["w2"] * s2
    b2 = (p["b2"] - p["m2"]) * s2 + p["be2"]

    w3, b3 = p["w3"], p["b3"]

    out_dim = p["w4"].shape[1]
    out_pad = _round_up(out_dim, LANE)
    w4 = jnp.pad(p["w4"], ((0, 0), (0, out_pad - out_dim)))
    b4 = jnp.pad(p["b4"], ((0, 0), (0, out_pad - out_dim)))

    weights = tuple(w.astype(jnp.bfloat16) for w in (w1, w2, w3, w4))

    offs, segs, off = [], [], 0
    for b in (b1, b2, b3, b4):
        d = b.shape[1]
        dp = _round_up(d, LANE)
        segs.append(jnp.pad(b.astype(jnp.float32), ((0, 0), (0, dp - d))))
        offs.append(off)
        off += dp
    bias = jnp.concatenate(segs, axis=1)  # (1, sum of padded widths), f32
    dims = (b1.shape[1], b2.shape[1], b3.shape[1], out_pad)
    return weights, bias, tuple(offs), dims, out_dim


# ----------------------------------------------------------------------------
# Wrapper
# ----------------------------------------------------------------------------
def value_only_nn(x, params, *, tile_b=4096):
    """x: (B, input_size) f32.  Returns (B, 6) f32."""
    weights, bias, offs, dims, out_dim = fold_params(params)
    B, in_dim = x.shape
    out_pad = dims[3]

    # Adaptive batch tiling:
    #   * target ~tile_b rows/tile (amortizes ~0.35 us per-grid-step overhead;
    #     sweep tile_b in {2048, 4096, 8192})
    #   * >=2 tiles whenever the batch can be split -> both v7x TCs get work
    #   * padding waste bounded by SUBLANE rows per tile (<<5% for real batches)
    B_min = _round_up(B, SUBLANE)
    n_tiles = max(1, _cdiv(B_min, tile_b))
    if n_tiles == 1 and B_min >= 2 * SUBLANE:
        n_tiles = 2
    tb = _round_up(_cdiv(B_min, n_tiles), SUBLANE)
    B_pad = n_tiles * tb

    # Only materialize a padded copy of x when the batch is not tile-aligned
    # (and then only by <= 16*n_tiles rows); x stays f32 until inside the kernel.
    x_in = x if B_pad == B else jnp.pad(x, ((0, B_pad - B), (0, 0)))

    kernel = functools.partial(mlp_kernel, offs=offs, dims=dims)

    def resident(arr):  # whole array, same block every grid step -> VMEM-resident
        return pl.BlockSpec(arr.shape, lambda i: (0, 0))

    out = pl.pallas_call(
        kernel,
        out_shape=jax.ShapeDtypeStruct((B_pad, out_pad), jnp.bfloat16),
        grid_spec=pltpu.PrefetchScalarGridSpec(
            num_scalar_prefetch=0,
            grid=(n_tiles,),
            in_specs=[
                pl.BlockSpec((tb, in_dim), lambda i: (i, 0)),  # streamed x tile (f32)
                resident(weights[0]),
                resident(weights[1]),
                resident(weights[2]),
                resident(weights[3]),
                resident(bias),
            ],
            out_specs=pl.BlockSpec((tb, out_pad), lambda i: (i, 0)),
        ),
        compiler_params=pltpu.CompilerParams(
            dimension_semantics=("parallel",),       # shards batch tiles across v7x's 2 TCs
            vmem_limit_bytes=48 * 1024 * 1024,       # room for tb up to ~8192 under v7x 64 MiB
        ),
    )(x_in, *weights, bias)

    return out[:B, :out_dim].astype(jnp.float32)


# ----------------------------------------------------------------------------
# Parameter init (PyTorch-like defaults, deterministic non-trivial BN stats)
# ----------------------------------------------------------------------------
def init_params(key, input_size, hidden_size=256):
    h1, h2, h3, out = hidden_size, hidden_size // 2, hidden_size // 4, 6
    ks = jax.random.split(key, 8)

    def lin(kw, kb, fan_in, fan_out):
        bound = 1.0 / jnp.sqrt(jnp.float32(fan_in))
        w = jax.random.uniform(kw, (fan_in, fan_out), jnp.float32, -bound, bound)
        b = jax.random.uniform(kb, (1, fan_out), jnp.float32, -bound, bound)
        return w, b

    w1, b1 = lin(ks[0], ks[1], input_size, h1)
    w2, b2 = lin(ks[2], ks[3], h1, h2)
    w3, b3 = lin(ks[4], ks[5], h2, h3)
    w4, b4 = lin(ks[6], ks[7], h3, out)

    def bn(dim, scale):
        i = jnp.arange(dim, dtype=jnp.float32)[None, :]
        g = 1.0 + 0.01 * scale * jnp.cos(i)
        be = 0.01 * scale * jnp.sin(i)
        m = 0.05 * scale * jnp.sin(0.5 * i)
        v = 1.0 + 0.1 * scale * (0.5 + 0.5 * jnp.cos(0.3 * i))
        return g, be, m, v

    g1, be1, m1, v1 = bn(h1, 1.0)
    g2, be2, m2, v2 = bn(h2, 2.0)

    return dict(
        w1=w1, b1=b1, g1=g1, be1=be1, m1=m1, v1=v1,
        w2=w2, b2=b2, g2=g2, be2=be2, m2=m2, v2=v2,
        w3=w3, b3=b3, w4=w4, b4=b4,
    )


# ----------------------------------------------------------------------------
# References
# ----------------------------------------------------------------------------
def reference_forward_f32(x, p):
    def bn(h, g, be, m, v):
        return (h - m) * jax.lax.rsqrt(v + BN_EPS) * g + be

    h = jnp.maximum(bn(x @ p["w1"] + p["b1"], p["g1"], p["be1"], p["m1"], p["v1"]), 0.0)
    h = jnp.maximum(bn(h @ p["w2"] + p["b2"], p["g2"], p["be2"], p["m2"], p["v2"]), 0.0)
    h = jnp.maximum(h @ p["w3"] + p["b3"], 0.0)
    return h @ p["w4"] + p["b4"]


def reference_forward_matched(x, weights, bias, offs, dims):
    """Same folded/bf16 numerics as the kernel (incl. the bf16 output cast)."""
    h = x.astype(jnp.bfloat16)
    for li, w in enumerate(weights):
        h = jnp.dot(h, w, preferred_element_type=jnp.float32)
        o, d = offs[li], dims[li]
        h = h + bias[:, o:o + d]
        if li < 3:
            h = jnp.maximum(h, 0.0).astype(jnp.bfloat16)
    return h.astype(jnp.bfloat16).astype(jnp.float32)


# ----------------------------------------------------------------------------
if __name__ == "__main__":
    key = jax.random.PRNGKey(0)
    k_x, k_p = jax.random.split(key)

    batch = 8
    input_size = 32
    hidden_size = 32  # layers: 32 -> 32 -> 16 -> 8 -> 6

    x = jax.random.normal(k_x, (batch, input_size), jnp.float32)
    params = init_params(k_p, input_size, hidden_size)

    out = jax.block_until_ready(value_only_nn(x, params))
    assert out.shape == (batch, 6)

    weights, bias, offs, dims, out_dim = fold_params(params)
    ref_matched = reference_forward_matched(x, weights, bias, offs, dims)[:, :out_dim]
    ref_f32 = reference_forward_f32(x, params)

    assert jnp.allclose(out, ref_matched, atol=1e-2, rtol=1e-2), \
        "mismatch vs matched-precision (bf16 folded) reference"
    assert jnp.allclose(out, ref_f32, atol=5e-2, rtol=5e-2), \
        "mismatch vs f32 eval-mode reference"

    print("KERNEL_OK")
</pallas_src>

<mosaic_0001>
module attributes {stable_mosaic.version = 11 : i64} {
  func.func @mlp_kernel(%arg0: i32, %arg1: memref<16x32xf32, #tpu.memory_space<vmem>>, %arg2: memref<32x32xbf16, #tpu.memory_space<vmem>>, %arg3: memref<32x16xbf16, #tpu.memory_space<vmem>>, %arg4: memref<16x8xbf16, #tpu.memory_space<vmem>>, %arg5: memref<8x128xbf16, #tpu.memory_space<vmem>>, %arg6: memref<1x512xf32, #tpu.memory_space<vmem>>, %arg7: memref<16x128xbf16, #tpu.memory_space<vmem>>) attributes {dimension_semantics = [#tpu.dimension_semantics<parallel>], iteration_bounds = array<i64: 1>, scalar_prefetch = 0 : i64, scratch_operands = 0 : i64, tpu.core_type = #tpu.core_type<tc>, window_params = [{transform_indices = @transform_0, window_bounds = array<i64: 16, 32>}, {pipeline_mode = #tpu.pipeline_mode<synchronous>, transform_indices = @transform_1, window_bounds = array<i64: 32, 32>}, {pipeline_mode = #tpu.pipeline_mode<synchronous>, transform_indices = @transform_2, window_bounds = array<i64: 32, 16>}, {pipeline_mode = #tpu.pipeline_mode<synchronous>, transform_indices = @transform_3, window_bounds = array<i64: 16, 8>}, {pipeline_mode = #tpu.pipeline_mode<synchronous>, transform_indices = @transform_4, window_bounds = array<i64: 8, 128>}, {pipeline_mode = #tpu.pipeline_mode<synchronous>, transform_indices = @transform_5, window_bounds = array<i64: 1, 512>}, {transform_indices = @transform_6, window_bounds = array<i64: 16, 128>}]} {
    %c0 = arith.constant 0 : index
    %c0_0 = arith.constant 0 : index
    %0 = vector.load %arg1[%c0, %c0_0] : memref<16x32xf32, #tpu.memory_space<vmem>>, vector<16x32xf32>
    %1 = arith.truncf %0 : vector<16x32xf32> to vector<16x32xbf16>
    %c0_1 = arith.constant 0 : index
    %c0_2 = arith.constant 0 : index
    %2 = vector.load %arg2[%c0_1, %c0_2] : memref<32x32xbf16, #tpu.memory_space<vmem>>, vector<32x32xbf16>
    %cst = arith.constant dense<0.000000e+00> : vector<16x32xf32>
    %3 = tpu.matmul %1, %2, %cst {dimension_numbers = #tpu.dot_dimension_numbers<[1], [0], [0], [1], [0, 0, 1, 1], [], []>} : vector<16x32xbf16>, vector<32x32xbf16>, vector<16x32xf32> -> vector<16x32xf32>
    %c0_3 = arith.constant 0 : index
    %c0_4 = arith.constant 0 : index
    %4 = vector.load %arg6[%c0_3, %c0_4] : memref<1x512xf32, #tpu.memory_space<vmem>>, vector<1x32xf32>
    %5 = vector.broadcast %4 : vector<1x32xf32> to vector<16x32xf32>
    %6 = arith.addf %3, %5 : vector<16x32xf32>
    %cst_5 = arith.constant 0.000000e+00 : f32
    %7 = vector.broadcast %cst_5 : f32 to vector<16x32xf32>
    %8 = arith.maximumf %6, %7 : vector<16x32xf32>
    %9 = arith.truncf %8 : vector<16x32xf32> to vector<16x32xbf16>
    %c0_6 = arith.constant 0 : index
    %c0_7 = arith.constant 0 : index
    %10 = vector.load %arg3[%c0_6, %c0_7] : memref<32x16xbf16, #tpu.memory_space<vmem>>, vector<32x16xbf16>
    %cst_8 = arith.constant dense<0.000000e+00> : vector<16x16xf32>
    %11 = tpu.matmul %9, %10, %cst_8 {dimension_numbers = #tpu.dot_dimension_numbers<[1], [0], [0], [1], [0, 0, 1, 1], [], []>} : vector<16x32xbf16>, vector<32x16xbf16>, vector<16x16xf32> -> vector<16x16xf32>
    %c0_9 = arith.constant 0 : index
    %c128 = arith.constant 128 : index
    %12 = vector.load %arg6[%c0_9, %c128] : memref<1x512xf32, #tpu.memory_space<vmem>>, vector<1x16xf32>
    %13 = vector.broadcast %12 : vector<1x16xf32> to vector<16x16xf32>
    %14 = arith.addf %11, %13 : vector<16x16xf32>
    %cst_10 = arith.constant 0.000000e+00 : f32
    %15 = vector.broadcast %cst_10 : f32 to vector<16x16xf32>
    %16 = arith.maximumf %14, %15 : vector<16x16xf32>
    %17 = arith.truncf %16 : vector<16x16xf32> to vector<16x16xbf16>
    %c0_11 = arith.constant 0 : index
    %c0_12 = arith.constant 0 : index
    %18 = vector.load %arg4[%c0_11, %c0_12] : memref<16x8xbf16, #tpu.memory_space<vmem>>, vector<16x8xbf16>
    %cst_13 = arith.constant dense<0.000000e+00> : vector<16x8xf32>
    %19 = tpu.matmul %17, %18, %cst_13 {dimension_numbers = #tpu.dot_dimension_numbers<[1], [0], [0], [1], [0, 0, 1, 1], [], []>} : vector<16x16xbf16>, vector<16x8xbf16>, vector<16x8xf32> -> vector<16x8xf32>
    %c0_14 = arith.constant 0 : index
    %c256 = arith.constant 256 : index
    %20 = vector.load %arg6[%c0_14, %c256] : memref<1x512xf32, #tpu.memory_space<vmem>>, vector<1x8xf32>
    %21 = vector.broadcast %20 : vector<1x8xf32> to vector<16x8xf32>
    %22 = arith.addf %19, %21 : vector<16x8xf32>
    %cst_15 = arith.constant 0.000000e+00 : f32
    %23 = vector.broadcast %cst_15 : f32 to vector<16x8xf32>
    %24 = arith.maximumf %22, %23 : vector<16x8xf32>
    %25 = arith.truncf %24 : vector<16x8xf32> to vector<16x8xbf16>
    %c0_16 = arith.constant 0 : index
    %c0_17 = arith.constant 0 : index
    %26 = vector.load %arg5[%c0_16, %c0_17] : memref<8x128xbf16, #tpu.memory_space<vmem>>, vector<8x128xbf16>
    %cst_18 = arith.constant dense<0.000000e+00> : vector<16x128xf32>
    %27 = tpu.matmul %25, %26, %cst_18 {dimension_numbers = #tpu.dot_dimension_numbers<[1], [0], [0], [1], [0, 0, 1, 1], [], []>} : vector<16x8xbf16>, vector<8x128xbf16>, vector<16x128xf32> -> vector<16x128xf32>
    %c0_19 = arith.constant 0 : index
    %c384 = arith.constant 384 : index
    %28 = vector.load %arg6[%c0_19, %c384] : memref<1x512xf32, #tpu.memory_space<vmem>>, vector<1x128xf32>
    %29 = vector.broadcast %28 : vector<1x128xf32> to vector<16x128xf32>
    %30 = arith.addf %27, %29 : vector<16x128xf32>
    %31 = arith.truncf %30 : vector<16x128xf32> to vector<16x128xbf16>
    %c0_20 = arith.constant 0 : index
    %c0_21 = arith.constant 0 : index
    %32 = vector.load %arg7[%c0_20, %c0_21] : memref<16x128xbf16, #tpu.memory_space<vmem>>, vector<16x128xbf16>
    tpu.vector_store %arg7[%c0_20, %c0_21], %31 {strides = array<i32>} : memref<16x128xbf16, #tpu.memory_space<vmem>>, vector<16x128xbf16>,
    return
  }
  func.func @transform_0(%arg0: i32) -> (i32, i32) {
    %c0_i32 = arith.constant 0 : i32
    %c0_i32_0 = arith.constant 0 : i32
    return %arg0, %c0_i32 : i32, i32
  }
  func.func @transform_1(%arg0: i32) -> (i32, i32) {
    %c0_i32 = arith.constant 0 : i32
    %c0_i32_0 = arith.constant 0 : i32
    %c0_i32_1 = arith.constant 0 : i32
    return %c0_i32, %c0_i32_0 : i32, i32
  }
  func.func @transform_2(%arg0: i32) -> (i32, i32) {
    %c0_i32 = arith.constant 0 : i32
    %c0_i32_0 = arith.constant 0 : i32
    %c0_i32_1 = arith.constant 0 : i32
    return %c0_i32, %c0_i32_0 : i32, i32
  }
  func.func @transform_3(%arg0: i32) -> (i32, i32) {
    %c0_i32 = arith.constant 0 : i32
    %c0_i32_0 = arith.constant 0 : i32
    %c0_i32_1 = arith.constant 0 : i32
    return %c0_i32, %c0_i32_0 : i32, i32
  }
  func.func @transform_4(%arg0: i32) -> (i32, i32) {
    %c0_i32 = arith.constant 0 : i32
    %c0_i32_0 = arith.constant 0 : i32
    %c0_i32_1 = arith.constant 0 : i32
    return %c0_i32, %c0_i32_0 : i32, i32
  }
  func.func @transform_5(%arg0: i32) -> (i32, i32) {
    %c0_i32 = arith.constant 0 : i32
    %c0_i32_0 = arith.constant 0 : i32
    %c0_i32_1 = arith.constant 0 : i32
    return %c0_i32, %c0_i32_0 : i32, i32
  }
  func.func @transform_6(%arg0: i32) -> (i32, i32) {
    %c0_i32 = arith.constant 0 : i32
    %c0_i32_0 = arith.constant 0 : i32
    return %arg0, %c0_i32 : i32, i32
  }
}

</mosaic_0001>

<llo_original>
// kernel: tpu_custom_call.1
$region0: #{tpu_custom_call.1}
  #allocation0 [shape = 'u32[]', space=smem, size = 0x4, offset = 0x4, fixed_abs, tag = 'smem constant byte address 0x4 - core index']
  #allocation1 [shape = 'u32[72,128]{1,0:T(1,128)}', space=vmem, size = 0x9000, scoped, tag = 'internal scratch']
  %s0 = inlined_call_operand.vmem [shape: f32[16,32], index: 0, kind: input, shape index: {}]
  %s1 = inlined_call_operand.hbm [shape: bf16[32,32], index: 1, kind: input, shape index: {}]
  %s2 = inlined_call_operand.vmem [shape: bf16[32,16], index: 2, kind: input, shape index: {}]
  %s3 = inlined_call_operand.vmem [shape: bf16[16,8], index: 3, kind: input, shape index: {}]
  %s4 = inlined_call_operand.vmem [shape: bf16[8,128], index: 4, kind: input, shape index: {}]
  %s5 = inlined_call_operand.vmem [shape: f32[1,512], index: 5, kind: input, shape index: {}]
  %s6 = inlined_call_operand.hbm [shape: bf16[16,128], index: 6, kind: output, shape index: {}]
  %s7 = sld [smem:[#allocation0]]
  $region38: #{tpu_custom_call.1} parent=0
    _
  %s9 = ssub.s32 1, %s7
  %s10 = scalar_select 0, %s9, %s7
  $region1: #{tpu_custom_call.1} parent=0
    #allocation2 [shape = 'u8[8192]{0}', space=vmem, size = 0x2000, scoped, tag = 'input window, operand 1, single buffered']
    #allocation3 [shape = 's32[1]{0}', space=sflag, size = 0x4, scoped, tag = 'scoped memory for tpu_custom_call.1']
    #allocation4 [shape = 's32[1]{0}', space=sflag, size = 0x4, scoped, tag = 'scoped memory for tpu_custom_call.1']
    #allocation5 [shape = 'u8[4096]{0}', space=vmem, size = 0x1000, scoped, tag = 'output window, operand 0, single buffered']
    %11 = vsyncpa [#allocation3], 0
    %12 = vsyncpa [#allocation4], 0
    // Predicated region
    $region2: #{tpu_custom_call.1} parent=1 // pred_check
      _
    $region3: #{tpu_custom_call.1} parent=1 // pred_check_branch
      %14 = sbr.rel (0) target = $region5
    $region4: #{tpu_custom_call.1} parent=1 // pred_region
      _
    $region5: #{tpu_custom_call.1} parent=1 // pred_fallthru
      _
    // Predicated region
    $region6: #{tpu_custom_call.1} parent=1 // pred_check
      _
    $region7: #{tpu_custom_call.1} parent=1 // pred_check_branch
      %16 = sbr.rel (0) target = $region9
    $region8: #{tpu_custom_call.1} parent=1 // pred_region
      %18 = vsyncadd [#allocation3], 0
      %s19 = sshll.u32 %s1, 4
      %s20 = int_to_ptr.hbm [resolvable:$true] %s19
      %s21 = sshll.u32 [#allocation2], 4
      %s22 = int_to_ptr.vmem [resolvable:$true] %s21
      %27 = dma.hbm_to_vmem [thread:$0]  %s20, 256, %s22, [#allocation3], 64, 64, 4
    $region9: #{tpu_custom_call.1} parent=1 // pred_fallthru
      _
    // Predicated region
    $region10: #{tpu_custom_call.1} parent=1 // pred_check
      _
    $region11: #{tpu_custom_call.1} parent=1 // pred_check_branch
      %29 = sbr.rel (0) target = $region13
    $region12: #{tpu_custom_call.1} parent=1 // pred_region
      _
    $region13: #{tpu_custom_call.1} parent=1 // pred_fallthru
      _
    // Predicated region
    $region14: #{tpu_custom_call.1} parent=1 // pred_check
      _
    $region15: #{tpu_custom_call.1} parent=1 // pred_check_branch
      %31 = sbr.rel (0) target = $region17
    $region16: #{tpu_custom_call.1} parent=1 // pred_region
      _
    $region17: #{tpu_custom_call.1} parent=1 // pred_fallthru
      _
    // Predicated region
    $region18: #{tpu_custom_call.1} parent=1 // pred_check
      _
    $region19: #{tpu_custom_call.1} parent=1 // pred_check_branch
      %33 = sbr.rel (0) target = $region21
    $region20: #{tpu_custom_call.1} parent=1 // pred_region
      _
    $region21: #{tpu_custom_call.1} parent=1 // pred_fallthru
      _
    // Predicated region
    $region22: #{tpu_custom_call.1} parent=1 // pred_check
      _
    $region23: #{tpu_custom_call.1} parent=1 // pred_check_branch
      %35 = sbr.rel (0) target = $region25
    $region24: #{tpu_custom_call.1} parent=1 // pred_region
      _
    $region25: #{tpu_custom_call.1} parent=1 // pred_fallthru
      _
    // Predicated region
    $region26: #{tpu_custom_call.1} parent=1 // pred_check
      _
    $region27: #{tpu_custom_call.1} parent=1 // pred_check_branch
      %37 = sbr.rel (0) target = $region29
    $region28: #{tpu_custom_call.1} parent=1 // pred_region
      %39 = dma.done [#allocation3], 256
    $region29: #{tpu_custom_call.1} parent=1 // pred_fallthru
      _
    %v41 = vld [vmem:[%s0] sm:$0xff]
    %v42 = vld [vmem:[%s0 + $0x8] sm:$0xff]
    %v43 = vpack.c.bf16 %v42, %v41
    %v44 = vld [vmem:[#allocation2] sm:$0xf]
    %v45 = vld [vmem:[#allocation2 + $0x4] sm:$0xf]
    %v46 = vld [vmem:[#allocation2 + $0x8] sm:$0xf]
    %v47 = vld [vmem:[#allocation2 + $0xc] sm:$0xf]
    %v48 = vld [vmem:[%s5] sm:$0x1]
    %v50 = vperm.slane %v48, 0
    %v56 = vunpack.c.l.b16 %v44
    %v57 = vunpack.c.l.b16 %v45
    %v58 = vunpack.c.l.b16 %v46
    %v59 = vunpack.c.l.b16 %v47
    %v60 = vpack.c.b16 %v57, %v56
    %v61 = vpack.c.b16 %v59, %v58
    %vm64 = vcmask 261120
    %v66 = vsel %vm64, %v43, 0
    %68 = vmatpush.bf16.msra.mxu0 0
    %69 = vmatpush.bf16.msra.mxu0 0
    %70 = vmatpush.bf16.msra.mxu0 0
    %71 = vmatpush.bf16.msra.mxu0 0
    %72 = vmatpush.bf16.msra.mxu0 0
    %73 = vmatpush.bf16.msra.mxu0 0
    %74 = vmatpush.bf16.msra.mxu0 %v61
    %75 = vmatpush.bf16.msra.mxu0 %v60
    %76 = vmatmul.bf16.gmra.mxu0 %v66
    %v77 = vpop.f32.mrf.mxu0
    %v78 = vadd.f32 %v50, %v77
    %v79 = vpop.f32.mrf.mxu0
    %v80 = vadd.f32 %v50, %v79
    %81 = vdwg.mxu0
    %v82 = vmax.f32 %v78, 0.0
    %v83 = vmax.f32 %v80, 0.0
    %v84 = vpack.c.bf16 %v83, %v82
    %v85 = vld [vmem:[%s2] sm:$0xf]
    %v86 = vld [vmem:[%s2 + $0x4] sm:$0xf]
    %v87 = vld [vmem:[%s2 + $0x8] sm:$0xf]
    %v88 = vld [vmem:[%s2 + $0xc] sm:$0xf]
    %v89 = vld [vmem:[%s5 + $0x1] sm:$0x1]
    %v91 = vperm.slane %v89, 0
    %v97 = vunpack.c.l.b16 %v85
    %v98 = vunpack.c.l.b16 %v86
    %v99 = vunpack.c.l.b16 %v87
    %v100 = vunpack.c.l.b16 %v88
    %v101 = vpack.c.b16 %v98, %v97
    %v102 = vpack.c.b16 %v100, %v99
    %v106 = vsel %vm64, %v84, 0
    %108 = vmatpush.bf16.msra.mxu0 0
    %109 = vmatpush.bf16.msra.mxu0 0
    %110 = vmatpush.bf16.msra.mxu0 0
    %111 = vmatpush.bf16.msra.mxu0 0
    %112 = vmatpush.bf16.msra.mxu0 0
    %113 = vmatpush.bf16.msra.mxu0 0
    %114 = vmatpush.bf16.msra.mxu0 %v102
    %115 = vmatpush.bf16.msra.mxu0 %v101
    %116 = vmatmul.bf16.gmra.mxu0 %v106
    %v117 = vpop.f32.mrf.mxu0
    %v118 = vadd.f32 %v91, %v117
    %v119 = vpop.f32.mrf.mxu0
    %v120 = vadd.f32 %v91, %v119
    %121 = vdwg.mxu0
    %v122 = vmax.f32 %v118, 0.0
    %v123 = vmax.f32 %v120, 0.0
    %v124 = vpack.c.bf16 %v123, %v122
    %v125 = vld [vmem:[%s3] sm:$0xf]
    %v126 = vld [vmem:[%s3 + $0x4] sm:$0xf]
    %v127 = vld [vmem:[%s5 + $0x2] sm:$0x1]
    %v129 = vperm.slane %v127, 0
    %v133 = vunpack.c.l.b16 %v125
    %v134 = vunpack.c.l.b16 %v126
    %v135 = vpack.c.b16 %v134, %v133
    %vm137 = vcmask 130048
    %v139 = vsel %vm137, %v124, 0
    %141 = vmatpush.bf16.msra.mxu0 0
    %142 = vmatpush.bf16.msra.mxu0 0
    %143 = vmatpush.bf16.msra.mxu0 0
    %144 = vmatpush.bf16.msra.mxu0 0
    %145 = vmatpush.bf16.msra.mxu0 0
    %146 = vmatpush.bf16.msra.mxu0 0
    %147 = vmatpush.bf16.msra.mxu0 0
    %148 = vmatpush.bf16.msra.mxu0 %v135
    %149 = vmatmul.bf16.gmra.mxu0 %v139
    %v150 = vpop.f32.mrf.mxu0
    %v151 = vadd.f32 %v129, %v150
    %v152 = vpop.f32.mrf.mxu0
    %v153 = vadd.f32 %v129, %v152
    %154 = vdwg.mxu0
    %v155 = vmax.f32 %v151, 0.0
    %v156 = vmax.f32 %v153, 0.0
    %v157 = vpack.c.bf16 %v156, %v155
    %v158 = vld [vmem:[%s4] sm:$0xf]
    %v159 = vld [vmem:[%s5 + $0x3] sm:$0x1]
    %v161 = vperm.slane %v159, 0
    %vm163 = vcmask 64512
    %v165 = vsel %vm163, %v157, 0
    %vm167 = vcmask 1043456
    %v169 = vsel %vm167, %v158, 0
    %171 = vmatpush.bf16.msra.mxu0 0
    %172 = vmatpush.bf16.msra.mxu0 0
    %173 = vmatpush.bf16.msra.mxu0 0
    %174 = vmatpush.bf16.msra.mxu0 0
    %175 = vmatpush.bf16.msra.mxu0 0
    %176 = vmatpush.bf16.msra.mxu0 0
    %177 = vmatpush.bf16.msra.mxu0 0
    %178 = vmatpush.bf16.msra.mxu0 %v169
    %179 = vmatmul.bf16.gmra.mxu0 %v165
    %v180 = vpop.f32.mrf.mxu0
    %v181 = vadd.f32 %v161, %v180
    %v182 = vpop.f32.mrf.mxu0
    %v183 = vadd.f32 %v161, %v182
    %184 = vdwg.mxu0
    %v185 = vpack.c.bf16 %v181, %v181
    %v186 = vpack.c.bf16 %v183, %v183
    %187 = vst [vmem:[#allocation5] sm:$0xf] %v185
    %188 = vst [vmem:[#allocation5 + $0x4] sm:$0xf] %v186
    // Predicated region
    $region30: #{tpu_custom_call.1} parent=1 // pred_check
      _
    $region31: #{tpu_custom_call.1} parent=1 // pred_check_branch
      %190 = sbr.rel (0) target = $region33
    $region32: #{tpu_custom_call.1} parent=1 // pred_region
      %192 = vsyncadd [#allocation4], 0
      %s193 = sshll.u32 [#allocation5], 4
      %s194 = int_to_ptr.vmem [resolvable:$true] %s193
      %s195 = sshll.u32 %s6, 4
      %s196 = int_to_ptr.hbm [resolvable:$true] %s195
      %201 = dma.vmem_to_hbm [thread:$0]  %s194, 128, %s196, [#allocation4], 64, 64, 4
    $region33: #{tpu_custom_call.1} parent=1 // pred_fallthru
      _
    // Predicated region
    $region34: #{tpu_custom_call.1} parent=1 // pred_check
      _
    $region35: #{tpu_custom_call.1} parent=1 // pred_check_branch
      %203 = sbr.rel (0) target = $region37
    $region36: #{tpu_custom_call.1} parent=1 // pred_region
      %205 = dma.done [#allocation4], 128
    $region37: #{tpu_custom_call.1} parent=1 // pred_fallthru
      _
    %206 = vsyncpa [#allocation3], 1
    %207 = vsyncpa [#allocation4], 1

</llo_original>
